<compile_context>
chip_gen: v5e
topology: v5e:2x2
jax: 0.10.0
libtpu: 0.0.40
codegen_flags: <defaults>
</compile_context>

<pallas_src>
import functools
import math

import jax
import jax.numpy as jnp
from jax import lax
from jax.experimental import pallas as pl
from jax.experimental.pallas import tpu as pltpu

MIB = 1024 * 1024


def _rmsnorm_kernel(x_ref, gamma_ref, o_ref, *, scale, eps, dim, mask_lanes,
                    lowp_out):
    # x_ref: (row_tile, dim), gamma_ref: (1, dim), o_ref: (row_tile, dim)
    x = x_ref[...]
    xf = x.astype(jnp.float32)
    xsq = xf * xf
    if mask_lanes:
        # dim % 128 != 0: the physical VMEM tile has padded lanes whose
        # contents are not guaranteed zero. Zero them before the row
        # reduction (logical no-op, physical safety).
        col = lax.broadcasted_iota(jnp.int32, xsq.shape, dimension=1)
        xsq = jnp.where(col < dim, xsq, 0.0)
    sq_sum = jnp.sum(xsq, axis=-1, keepdims=True)                # (row_tile, 1)
    # 1 / max(||x||, eps) == rsqrt(max(sum(x^2), eps^2)); fold in sqrt(dim).
    r = lax.rsqrt(jnp.maximum(sq_sum, eps * eps)) * scale        # f32, EUP rsqrt
    g = gamma_ref[...]
    if lowp_out:
        # 16-bit inputs: final scaling in the input dtype (v6e/v7x bf16 VALU);
        # halves the f32 temporaries per tile.
        o_ref[...] = ((x * r.astype(x.dtype)) * g.astype(x.dtype)).astype(o_ref.dtype)
    else:
        o_ref[...] = (xf * r * g.astype(jnp.float32)).astype(o_ref.dtype)


def _rms_norm_ref(x, gamma, eps):
    dim = x.shape[-1]
    xf = x.astype(jnp.float32)
    norm = jnp.maximum(jnp.sqrt(jnp.sum(xf * xf, axis=-1, keepdims=True)), eps)
    out = xf / norm * (float(dim) ** 0.5) * gamma.astype(jnp.float32)
    return out.astype(x.dtype)


def _device_budgets():
    """Return (block_bytes_f32_equiv, base_vmem_limit, vmem_capacity)."""
    vmem_cap = None
    try:
        info = pltpu.get_tpu_info()
        vmem_cap = int(getattr(info, "vmem_capacity_bytes", 0)) or None
    except Exception:
        vmem_cap = None
    if vmem_cap is None:
        # Unknown chip: conservative budgets that fit every generation.
        return 4 * MIB, 40 * MIB, 64 * MIB
    if vmem_cap <= 64 * MIB:
        # v7x-class: ~3.2 TB/s HBM wants big blocks; 64 MiB physical VMEM.
        return 8 * MIB, 48 * MIB, vmem_cap
    # 128 MiB VMEM machines (v5e ~0.8 TB/s, v6e ~1.35 TB/s).
    return 4 * MIB, 64 * MIB, vmem_cap


def rms_norm(x, gamma, *, eps=1e-12, block_bytes=None,
             min_pallas_elements=128 * 1024):
    """x: (..., dim) array, gamma: (dim,) parameter. Same shape/dtype as x."""
    *lead, dim = x.shape
    rows = math.prod(lead) if lead else 1

    # Small workloads: pallas_call fixed overhead dwarfs the work; XLA's fused
    # elementwise+reduce is already at roofline here.
    if rows * dim < min_pallas_elements:
        return _rms_norm_ref(x, gamma, eps)

    itemsize = jnp.dtype(x.dtype).itemsize
    sublane = max(8, 32 // itemsize)          # 8 f32, 16 bf16, 32 int8/fp8

    auto_block, base_limit, vmem_cap = _device_budgets()
    if block_bytes is None:
        block_bytes = auto_block

    dim_phys = -(-dim // 128) * 128           # lane-padded VMEM footprint only
    bytes_per_row = dim_phys * max(itemsize, 4)   # budget in f32-equivalent

    if rows <= sublane:
        row_tile = rows                       # block == full extent (legal)
    else:
        budget_tile = max(sublane,
                          (block_bytes // bytes_per_row) // sublane * sublane)
        # Target >=4 grid steps when rows permit: keeps the pipeline full and
        # gives each of v7x's two TensorCores >=2 steps of the parallel axis.
        quarter = -(-rows // 4)
        steps_tile = -(-quarter // sublane) * sublane
        row_tile = max(sublane, min(budget_tile, steps_tile))

    grid = pl.cdiv(rows, row_tile)

    x2d = x.reshape(rows, dim)
    gamma2d = gamma.reshape(1, dim)

    lowp_out = jnp.issubdtype(x.dtype, jnp.floating) and itemsize <= 2
    kernel = functools.partial(
        _rmsnorm_kernel, scale=float(dim) ** 0.5, eps=float(eps), dim=dim,
        mask_lanes=(dim % 128 != 0), lowp_out=lowp_out)

    # VMEM budget: 2x double-buffered input + 2x output blocks + f32 temps.
    blk_phys = row_tile * dim_phys * itemsize
    f32_tmp = row_tile * dim_phys * 4
    need = 4 * blk_phys + 2 * f32_tmp + 2 * MIB
    vmem_limit = int(min(max(base_limit, need), vmem_cap - 8 * MIB))

    cost = pl.CostEstimate(
        flops=4 * rows * dim,
        transcendentals=rows,
        bytes_accessed=(2 * rows * dim + dim) * itemsize,
    )

    out2d = pl.pallas_call(
        kernel,
        out_shape=jax.ShapeDtypeStruct((rows, dim), x.dtype),
        grid_spec=pltpu.PrefetchScalarGridSpec(
            num_scalar_prefetch=0,
            grid=(grid,),
            in_specs=[
                pl.BlockSpec((row_tile, dim), lambda i: (i, 0)),
                pl.BlockSpec((1, dim), lambda i: (0, 0)),
            ],
            out_specs=pl.BlockSpec((row_tile, dim), lambda i: (i, 0)),
        ),
        compiler_params=pltpu.CompilerParams(
            dimension_semantics=("parallel",),
            vmem_limit_bytes=vmem_limit,
        ),
        cost_estimate=cost,
    )(x2d, gamma2d)

    return out2d.reshape(*lead, dim)


# TODO(synk): conditional path (dim_cond != None -> Linear(cond) -> gamma/beta
# modulation) is not exercised by the default module config and is left to
# plain JAX if ever needed.


if __name__ == "__main__":
    key = jax.random.PRNGKey(0)
    k1, k2, k3, k4, k5, kg = jax.random.split(key, 6)

    def ref_fn(x, gamma):
        d = x.shape[-1]
        xf = x.astype(jnp.float32)
        norm = jnp.maximum(
            jnp.sqrt(jnp.sum(xf * xf, axis=-1, keepdims=True)), 1e-12)
        return (xf / norm * (float(d) ** 0.5) * gamma.astype(jnp.float32)).astype(x.dtype)

    # (key, batch, seq, dim, dtype, force_pallas, atol)
    cases = [
        (k1, 2, 8, 32, jnp.float32, False, 1e-5),    # tiny: pure-JAX fast path
        (k2, 2, 64, 128, jnp.float32, True, 1e-5),   # lane-dense dim
        (k3, 2, 32, 96, jnp.float32, True, 1e-5),    # ragged dim (lane mask)
        (k4, 3, 22, 128, jnp.float32, True, 1e-5),   # ragged rows (last block)
        (k5, 2, 64, 128, jnp.bfloat16, True, 5e-2),  # low-precision output path
    ]

    for kk, batch, seq, dim, dtype, force, atol in cases:
        x = jax.random.normal(kk, (batch, seq, dim), dtype=jnp.float32).astype(dtype)
        gamma = jnp.ones((dim,), dtype=jnp.float32)
        if dim == 128:
            gamma = gamma + 0.1 * jax.random.normal(kg, (dim,), dtype=jnp.float32)

        kwargs = {"min_pallas_elements": 0} if force else {}
        out = jax.block_until_ready(rms_norm(x, gamma, **kwargs))
        ref = ref_fn(x, gamma)
        assert out.shape == x.shape and out.dtype == x.dtype
        assert jnp.allclose(out.astype(jnp.float32), ref.astype(jnp.float32),
                            atol=atol, rtol=atol), (batch, seq, dim, dtype)

    print("KERNEL_OK")
</pallas_src>

<mosaic_0001>
module attributes {stable_mosaic.version = 11 : i64} {
  func.func @_rmsnorm_kernel(%arg0: i32, %arg1: memref<32x128xf32, #tpu.memory_space<vmem>>, %arg2: memref<1x128xf32, #tpu.memory_space<vmem>>, %arg3: memref<32x128xf32, #tpu.memory_space<vmem>>) attributes {dimension_semantics = [#tpu.dimension_semantics<parallel>], iteration_bounds = array<i64: 4>, scalar_prefetch = 0 : i64, scratch_operands = 0 : i64, tpu.core_type = #tpu.core_type<tc>, window_params = [{transform_indices = @transform_0, window_bounds = array<i64: 32, 128>}, {pipeline_mode = #tpu.pipeline_mode<synchronous>, transform_indices = @transform_1, window_bounds = array<i64: 1, 128>}, {transform_indices = @transform_2, window_bounds = array<i64: 32, 128>}]} {
    %c0 = arith.constant 0 : index
    %c0_0 = arith.constant 0 : index
    %0 = vector.load %arg1[%c0, %c0_0] : memref<32x128xf32, #tpu.memory_space<vmem>>, vector<32x128xf32>
    %1 = arith.mulf %0, %0 : vector<32x128xf32>
    %cst = arith.constant dense<0.000000e+00> : vector<32xf32>
    %2 = vector.multi_reduction <add>, %1, %cst [1] : vector<32x128xf32> to vector<32xf32>
    %3 = vector.shape_cast %2 : vector<32xf32> to vector<32x1xf32>
    %cst_1 = arith.constant 1.000000e-24 : f32
    %4 = vector.broadcast %cst_1 : f32 to vector<32x1xf32>
    %5 = arith.maximumf %3, %4 : vector<32x1xf32>
    %6 = math.rsqrt %5 : vector<32x1xf32>
    %cst_2 = arith.constant 11.3137083 : f32
    %7 = vector.broadcast %cst_2 : f32 to vector<32x1xf32>
    %8 = arith.mulf %6, %7 : vector<32x1xf32>
    %c0_3 = arith.constant 0 : index
    %c0_4 = arith.constant 0 : index
    %9 = vector.load %arg2[%c0_3, %c0_4] : memref<1x128xf32, #tpu.memory_space<vmem>>, vector<1x128xf32>
    %10 = vector.broadcast %8 : vector<32x1xf32> to vector<32x128xf32>
    %11 = arith.mulf %0, %10 : vector<32x128xf32>
    %12 = vector.broadcast %9 : vector<1x128xf32> to vector<32x128xf32>
    %13 = arith.mulf %11, %12 : vector<32x128xf32>
    %c0_5 = arith.constant 0 : index
    %c0_6 = arith.constant 0 : index
    %14 = vector.load %arg3[%c0_5, %c0_6] : memref<32x128xf32, #tpu.memory_space<vmem>>, vector<32x128xf32>
    tpu.vector_store %arg3[%c0_5, %c0_6], %13 {strides = array<i32>} : memref<32x128xf32, #tpu.memory_space<vmem>>, vector<32x128xf32>,
    return
  }
  func.func @transform_0(%arg0: i32) -> (i32, i32) {
    %c0_i32 = arith.constant 0 : i32
    %c0_i32_0 = arith.constant 0 : i32
    return %arg0, %c0_i32 : i32, i32
  }
  func.func @transform_1(%arg0: i32) -> (i32, i32) {
    %c0_i32 = arith.constant 0 : i32
    %c0_i32_0 = arith.constant 0 : i32
    %c0_i32_1 = arith.constant 0 : i32
    return %c0_i32, %c0_i32_0 : i32, i32
  }
  func.func @transform_2(%arg0: i32) -> (i32, i32) {
    %c0_i32 = arith.constant 0 : i32
    %c0_i32_0 = arith.constant 0 : i32
    return %arg0, %c0_i32 : i32, i32
  }
}

</mosaic_0001>

<llo_original>
// kernel: tpu_custom_call.1
$region0: #{tpu_custom_call.1}
  #allocation0 [shape = 'u32[]', space=smem, size = 0x4, offset = 0x4, fixed_abs, tag = 'smem constant byte address 0x4 - core index']
  #allocation1 [shape = 'u32[72,128]{1,0:T(1,128)}', space=vmem, size = 0x9000, scoped, tag = 'internal scratch']
  %s0 = inlined_call_operand.hbm [shape: f32[128,128], index: 0, kind: input, shape index: {}]
  %s1 = inlined_call_operand.hbm [shape: f32[1,128], index: 1, kind: input, shape index: {}]
  %s2 = inlined_call_operand.hbm [shape: f32[128,128], index: 2, kind: output, shape index: {}]
  %s3 = sld [smem:[#allocation0]]
  $region49: #{tpu_custom_call.1} parent=0
    _
  %s5 = ssub.s32 1, %s3
  %s6 = scalar_select 0, %s5, %s3
  $region1: #{tpu_custom_call.1} parent=0
    #allocation2 [shape = 'u8[32768]{0}', space=vmem, size = 0x8000, scoped, tag = 'input window, operand 0']
    #allocation3 [shape = 's32[2]{0}', space=sflag, size = 0x8, scoped, tag = 'scoped memory for tpu_custom_call.1']
    #allocation4 [shape = 's32[2]{0}', space=sflag, size = 0x8, scoped, tag = 'scoped memory for tpu_custom_call.1']
    #allocation5 [shape = 'u8[512]{0}', space=vmem, size = 0x400, scoped, tag = 'input window, operand 1, single buffered']
    #allocation6 [shape = 's32[1]{0}', space=sflag, size = 0x4, scoped, tag = 'scoped memory for tpu_custom_call.1']
    #allocation7 [shape = 'u8[32768]{0}', space=vmem, size = 0x8000, scoped, tag = 'output window, operand 0']
    %7 = vsyncpa [#allocation3], 0
    %s8 = scalar_lea.sflag [#allocation3], 1
    %9 = vsyncpa %s8, 0
    %10 = vsyncpa [#allocation6], 0
    %11 = vsyncpa [#allocation4], 0
    %s12 = scalar_lea.sflag [#allocation4], 1
    %13 = vsyncpa %s12, 0
    loop: start=0, step=1, limit=6
    $region2: #{tpu_custom_call.1} parent=1 // loop_pre_header
      _
    $region3: #{tpu_custom_call.1} parent=1 // loop_header
      %s15 = sphi 0, %s19
      %p16 = scmp.ge.s32.totalorder %s15, 6
      %s25 = sphi 0, %s27
      %s28 = sphi 0, %s25
      %s29 = sphi 0, %s28
      %s45 = sphi 0, %s29
      %s49 = sphi 0, %s49
      %s51 = sphi 0, %s49
      %s52 = sphi 0, %s51
      %s66 = sphi 0, %s52
      %s72 = sphi 0, %s74
      %s75 = sphi 0, %s72
      %s76 = sphi 0, %s75
      %s92 = sphi 0, %s76
    $region4: #{tpu_custom_call.1} parent=1 // loop_header_branch
      %18 = sbr.rel (%p16) target = $region8
    $region5: #{tpu_custom_call.1} parent=1 // loop_body
      %s20 = ssub.s32 %s15, 1
      %s21 = ssub.s32 %s15, 2
      %s22 = sadd.s32 %s15, 1
      %s23 = ssub.s32 %s15, %s22
      %p24 = scmp.eq.s32.totalorder %s23, 0
      %s26 = sadd.s32 %s25, 1
      %s27 = scalar_select %p24, %s25, %s26
      %p30 = pneg %p24
      %p31 = scmp.eq.s32.totalorder %s15, 3
      %p32 = por %p30, %p31
      %p33 = scmp.ne.s32.totalorder %s25, %s28
      %p34 = scmp.eq.s32.totalorder %s15, 0
      %p35 = por %p33, %p34
      %p36 = scmp.ne.s32.totalorder %s25, %s28
      %p37 = scmp.eq.s32.totalorder %s20, 3
      %p38 = por %p36, %p37
      %p39 = scmp.ne.s32.totalorder %s28, %s29
      %p40 = scmp.eq.s32.totalorder %s20, 0
      %p41 = por %p39, %p40
      %p42 = scmp.ne.s32.totalorder %s28, %s29
      %p43 = scmp.eq.s32.totalorder %s21, 3
      %p44 = por %p42, %p43
      %p46 = scmp.ne.s32.totalorder %s29, %s45
      %p47 = scmp.eq.s32.totalorder %s21, 0
      %p48 = por %p46, %p47
      %s50 = sadd.s32 %s49, 1
      %p53 = scmp.eq.s32.totalorder %s15, 3
      %p54 = scmp.ne.s32.totalorder %s49, %s51
      %p55 = scmp.eq.s32.totalorder %s15, 0
      %p56 = por %p54, %p55
      %p57 = scmp.ne.s32.totalorder %s49, %s51
      %p58 = scmp.eq.s32.totalorder %s20, 3
      %p59 = por %p57, %p58
      %p60 = scmp.ne.s32.totalorder %s51, %s52
      %p61 = scmp.eq.s32.totalorder %s20, 0
      %p62 = por %p60, %p61
      %p63 = scmp.ne.s32.totalorder %s51, %s52
      %p64 = scmp.eq.s32.totalorder %s21, 3
      %p65 = por %p63, %p64
      %p67 = scmp.ne.s32.totalorder %s52, %s66
      %p68 = scmp.eq.s32.totalorder %s21, 0
      %p69 = por %p67, %p68
      %s70 = ssub.s32 %s15, %s22
      %p71 = scmp.eq.s32.totalorder %s70, 0
      %s73 = sadd.s32 %s72, 1
      %s74 = scalar_select %p71, %s72, %s73
      %p77 = pneg %p71
      %p78 = scmp.eq.s32.totalorder %s15, 3
      %p79 = por %p77, %p78
      %p80 = scmp.ne.s32.totalorder %s72, %s75
      %p81 = scmp.eq.s32.totalorder %s15, 0
      %p82 = por %p80, %p81
      %p83 = scmp.ne.s32.totalorder %s72, %s75
      %p84 = scmp.eq.s32.totalorder %s20, 3
      %p85 = por %p83, %p84
      %p86 = scmp.ne.s32.totalorder %s75, %s76
      %p87 = scmp.eq.s32.totalorder %s20, 0
      %p88 = por %p86, %p87
      %p89 = scmp.ne.s32.totalorder %s75, %s76
      %p90 = scmp.eq.s32.totalorder %s21, 3
      %p91 = por %p89, %p90
      %p93 = scmp.ne.s32.totalorder %s76, %s92
      %p94 = scmp.eq.s32.totalorder %s21, 0
      %p95 = por %p93, %p94
      %p96 = scmp.le.s32.totalorder 1, %s15
      %p97 = scmp.lt.s32.totalorder %s15, 5
      %p98 = pnand %p96, %p97
      %p99 = pneg %p98
      // Predicated region
      $region9: #{tpu_custom_call.1} parent=5 // pred_check
        _
      $region10: #{tpu_custom_call.1} parent=5 // pred_check_branch
        %101 = sbr.rel (%p98) target = $region12
      $region11: #{tpu_custom_call.1} parent=5 // pred_region
        %s102 = ssub.s32 %s15, 1
        // Predicated region
        $region13: #{tpu_custom_call.1} parent=11 // pred_check
          %p103 = pneg %p62
        $region14: #{tpu_custom_call.1} parent=11 // pred_check_branch
          %105 = sbr.rel (%p103) target = $region16
        $region15: #{tpu_custom_call.1} parent=11 // pred_region
          %107 = vsyncadd [#allocation6], 0
          %s109 = sshll.u32 %s1, 4
          %s110 = int_to_ptr.hbm [resolvable:$true] %s109
          %s111 = sshll.u32 [#allocation5], 4
          %s112 = int_to_ptr.vmem [resolvable:$true] %s111
          %114 = dma.hbm_to_vmem [thread:$0]  %s110, 16, %s112, [#allocation6]
        $region16: #{tpu_custom_call.1} parent=11 // pred_fallthru
          _
      $region12: #{tpu_custom_call.1} parent=5 // pred_fallthru
        _
      %p115 = scmp.lt.s32.totalorder %s15, 4
      // Predicated region
      $region17: #{tpu_custom_call.1} parent=5 // pred_check
        %p116 = pneg %p115
      $region18: #{tpu_custom_call.1} parent=5 // pred_check_branch
        %118 = sbr.rel (%p116) target = $region20
      $region19: #{tpu_custom_call.1} parent=5 // pred_region
        // Predicated region
        $region21: #{tpu_custom_call.1} parent=19 // pred_check
          %p119 = pneg %p35
        $region22: #{tpu_custom_call.1} parent=19 // pred_check_branch
          %121 = sbr.rel (%p119) target = $region24
        $region23: #{tpu_custom_call.1} parent=19 // pred_region
          %s122 = sand.u32 %s25, 1
          %s123 = scalar_lea.sflag [#allocation3], %s122
          %s124 = sand.u32 %s25, 1
          %s125 = smul.addr %s124, 32
          %s126 = scalar_lea.vmem [#allocation2], %s125
          %s127 = smul.u32 4, %s15
          %129 = vsyncadd %s123, 0
          %s130 = smul.addr %s127, 8
          %s131 = scalar_lea.hbm %s0, %s130
          %s132 = sshll.u32 %s131, 4
          %s133 = int_to_ptr.hbm [resolvable:$true] %s132
          %s134 = sshll.u32 %s126, 4
          %s135 = int_to_ptr.vmem [resolvable:$true] %s134
          %140 = dma.hbm_to_vmem [thread:$0]  %s133, 512, %s135, %s123, 128, 128, 8
        $region24: #{tpu_custom_call.1} parent=19 // pred_fallthru
          _
      $region20: #{tpu_custom_call.1} parent=5 // pred_fallthru
        _
      %p141 = scmp.le.s32.totalorder 1, %s15
      %p142 = scmp.lt.s32.totalorder %s15, 5
      %p143 = pnand %p141, %p142
      %p144 = pneg %p143
      // Predicated region
      $region25: #{tpu_custom_call.1} parent=5 // pred_check
        _
      $region26: #{tpu_custom_call.1} parent=5 // pred_check_branch
        %146 = sbr.rel (%p143) target = $region28
      $region27: #{tpu_custom_call.1} parent=5 // pred_region
        %s147 = ssub.s32 %s15, 1
        %s148 = sand.u32 %s28, 1
        %s149 = scalar_lea.sflag [#allocation3], %s148
        %s150 = sand.u32 %s28, 1
        %s151 = smul.addr %s150, 32
        %s152 = scalar_lea.vmem [#allocation2], %s151
        // Predicated region
        $region29: #{tpu_custom_call.1} parent=27 // pred_check
          %p153 = pneg %p41
        $region30: #{tpu_custom_call.1} parent=27 // pred_check_branch
          %155 = sbr.rel (%p153) target = $region32
        $region31: #{tpu_custom_call.1} parent=27 // pred_region
          %157 = dma.done %s149, 512
        $region32: #{tpu_custom_call.1} parent=27 // pred_fallthru
          _
        // Predicated region
        $region33: #{tpu_custom_call.1} parent=27 // pred_check
          %p158 = pneg %p62
        $region34: #{tpu_custom_call.1} parent=27 // pred_check_branch
          %160 = sbr.rel (%p158) target = $region36
        $region35: #{tpu_custom_call.1} parent=27 // pred_region
          %162 = dma.done [#allocation6], 16
        $region36: #{tpu_custom_call.1} parent=27 // pred_fallthru
          _
        %s163 = sand.u32 %s28, 1
        %s164 = scalar_lea.sflag [#allocation3], %s163
        %s165 = sand.u32 %s28, 1
        %s166 = smul.addr %s165, 32
        %s167 = scalar_lea.vmem [#allocation2], %s166
        %p168 = pneg %p41
        %p169 = pneg %p38
        %p170 = pneg %p62
        %p171 = pneg %p59
        %p172 = pneg %p88
        %p173 = pneg %p85
        %s174 = sand.u32 %s75, 1
        %s175 = scalar_lea.sflag [#allocation4], %s174
        %s176 = sand.u32 %s75, 1
        %s177 = smul.addr %s176, 32
        %s178 = scalar_lea.vmem [#allocation7], %s177
        %s179 = smul.u32 4, %s20
        %s180 = smul.u32 4, %s20
        %v181 = vld [vmem:[%s152] sm:$0xff]
        %v182 = vld [vmem:[%s152 + $0x8] sm:$0xff]
        %v183 = vld [vmem:[%s152 + $0x10] sm:$0xff]
        %v184 = vld [vmem:[%s152 + $0x18] sm:$0xff]
        %v185 = vmul.f32 %v181, %v181
        %v186 = vmul.f32 %v182, %v182
        %v187 = vmul.f32 %v183, %v183
        %v188 = vmul.f32 %v184, %v184
        %189 = vadd.xlane.f32.xlu0 %v185
        %v190 = vpop.xlane.xlu0 %189
        %191 = vadd.xlane.f32.xlu0 %v186
        %v192 = vpop.xlane.xlu0 %191
        %193 = vadd.xlane.f32.xlu0 %v187
        %v194 = vpop.xlane.xlu0 %193
        %195 = vadd.xlane.f32.xlu0 %v188
        %v196 = vpop.xlane.xlu0 %195
        %v197 = vmax.f32 %v190, 1e-24
        %v198 = vmax.f32 %v192, 1e-24
        %v199 = vmax.f32 %v194, 1e-24
        %v200 = vmax.f32 %v196, 1e-24
        %v201 = vrsqrt.pop %v197
        %v202 = vmul.f32 %v201, %v197
        %v203 = vmul.f32 %v202, %v201
        %v204 = vmul.f32 0.5, %v203
        %v205 = vsub.f32 1.5, %v204
        %v206 = vmul.f32 %v201, %v205
        %vm207 = vweird.f32 %v197
        %vm208 = vweird.f32 %v201
        %vm209 = vmor %vm207, %vm208
        %v210 = vsel %vm209, %v201, %v206
        %v211 = vrsqrt.pop %v198
        %v212 = vmul.f32 %v211, %v198
        %v213 = vmul.f32 %v212, %v211
        %v214 = vmul.f32 0.5, %v213
        %v215 = vsub.f32 1.5, %v214
        %v216 = vmul.f32 %v211, %v215
        %vm217 = vweird.f32 %v198
        %vm218 = vweird.f32 %v211
        %vm219 = vmor %vm217, %vm218
        %v220 = vsel %vm219, %v211, %v216
        %v221 = vrsqrt.pop %v199
        %v222 = vmul.f32 %v221, %v199
        %v223 = vmul.f32 %v222, %v221
        %v224 = vmul.f32 0.5, %v223
        %v225 = vsub.f32 1.5, %v224
        %v226 = vmul.f32 %v221, %v225
        %vm227 = vweird.f32 %v199
        %vm228 = vweird.f32 %v221
        %vm229 = vmor %vm227, %vm228
        %v230 = vsel %vm229, %v221, %v226
        %v231 = vrsqrt.pop %v200
        %v232 = vmul.f32 %v231, %v200
        %v233 = vmul.f32 %v232, %v231
        %v234 = vmul.f32 0.5, %v233
        %v235 = vsub.f32 1.5, %v234
        %v236 = vmul.f32 %v231, %v235
        %vm237 = vweird.f32 %v200
        %vm238 = vweird.f32 %v231
        %vm239 = vmor %vm237, %vm238
        %v240 = vsel %vm239, %v231, %v236
        %v241 = vmul.f32 %v210, 11.313708
        %v242 = vmul.f32 %v220, 11.313708
        %v243 = vmul.f32 %v230, 11.313708
        %v244 = vmul.f32 %v240, 11.313708
        %v245 = vld [vmem:[#allocation5] sm:$0x1]
        %v246 = vmul.f32 %v181, %v241
        %v247 = vmul.f32 %v182, %v242
        %v248 = vmul.f32 %v183, %v243
        %v249 = vmul.f32 %v184, %v244
        %v251 = vperm.slane %v245, 0
        %v253 = vmul.f32 %v246, %v251
        %v254 = vmul.f32 %v247, %v251
        %v255 = vmul.f32 %v248, %v251
        %v256 = vmul.f32 %v249, %v251
        %257 = vst [vmem:[%s178] sm:$0xff] %v253
        %258 = vst [vmem:[%s178 + $0x8] sm:$0xff] %v254
        %259 = vst [vmem:[%s178 + $0x10] sm:$0xff] %v255
        %260 = vst [vmem:[%s178 + $0x18] sm:$0xff] %v256
        %s261 = sand.u32 %s75, 1
        %s262 = scalar_lea.sflag [#allocation4], %s261
        %s263 = sand.u32 %s75, 1
        %s264 = smul.addr %s263, 32
        %s265 = scalar_lea.vmem [#allocation7], %s264
        // Predicated region
        $region37: #{tpu_custom_call.1} parent=27 // pred_check
          %p266 = pneg %p85
        $region38: #{tpu_custom_call.1} parent=27 // pred_check_branch
          %268 = sbr.rel (%p266) target = $region40
        $region39: #{tpu_custom_call.1} parent=27 // pred_region
          %s269 = smul.u32 4, %s20
          %271 = vsyncadd %s262, 0
          %s272 = smul.addr %s269, 8
          %s273 = scalar_lea.hbm %s2, %s272
          %s274 = sshll.u32 %s265, 4
          %s275 = int_to_ptr.vmem [resolvable:$true] %s274
          %s276 = sshll.u32 %s273, 4
          %s277 = int_to_ptr.hbm [resolvable:$true] %s276
          %282 = dma.vmem_to_hbm [thread:$0]  %s275, 512, %s277, %s262, 128, 128, 8
        $region40: #{tpu_custom_call.1} parent=27 // pred_fallthru
          _
      $region28: #{tpu_custom_call.1} parent=5 // pred_fallthru
        _
      %p283 = scmp.le.s32.totalorder 2, %s15
      // Predicated region
      $region41: #{tpu_custom_call.1} parent=5 // pred_check
        %p284 = pneg %p283
      $region42: #{tpu_custom_call.1} parent=5 // pred_check_branch
        %286 = sbr.rel (%p284) target = $region44
      $region43: #{tpu_custom_call.1} parent=5 // pred_region
        %s287 = ssub.s32 %s15, 2
        // Predicated region
        $region45: #{tpu_custom_call.1} parent=43 // pred_check
          %p288 = pneg %p91
        $region46: #{tpu_custom_call.1} parent=43 // pred_check_branch
          %290 = sbr.rel (%p288) target = $region48
        $region47: #{tpu_custom_call.1} parent=43 // pred_region
          %s291 = sand.u32 %s76, 1
          %s292 = scalar_lea.sflag [#allocation4], %s291
          %s293 = sand.u32 %s76, 1
          %s294 = smul.addr %s293, 32
          %s295 = scalar_lea.vmem [#allocation7], %s294
          %297 = dma.done %s292, 512
        $region48: #{tpu_custom_call.1} parent=43 // pred_fallthru
          _
      $region44: #{tpu_custom_call.1} parent=5 // pred_fallthru
        _
    $region6: #{tpu_custom_call.1} parent=1 // loop_footer
      %s19 = sadd.s32 1, %s15
    $region7: #{tpu_custom_call.1} parent=1 // loop_footer_branch
      %14 = sbr.rel target = $region3
    $region8: #{tpu_custom_call.1} parent=1 // loop_exit
      _
    %298 = vsyncpa [#allocation3], 1
    %s299 = scalar_lea.sflag [#allocation3], 1
    %300 = vsyncpa %s299, 1
    %301 = vsyncpa [#allocation6], 1
    %302 = vsyncpa [#allocation4], 1
    %s303 = scalar_lea.sflag [#allocation4], 1
    %304 = vsyncpa %s303, 1

</llo_original>
